<compile_context>
chip_gen: v5e
topology: v5e:2x2
jax: 0.10.0
libtpu: 0.0.40
codegen_flags: <defaults>
</compile_context>

<pallas_src>
import functools

import jax
import jax.numpy as jnp
from jax.experimental import pallas as pl
from jax.experimental.pallas import tpu as pltpu

# Real model uses midfc_channel = 1024 and head output 1024*5 = 5120.
# Scaled down for the self-contained test (shapes stay structurally identical).
MIDFC = 128
CONV_OUT = 64         # ResNet conv1 output channels (kept at 64)
KSIZE, STRIDE, PAD = 7, 2, 3
MAX_TILE_P = 512      # im2col rows per backbone grid step (upper bound)
VMEM_LIMIT = 48 * 1024 * 1024


def _round_up(x, m):
    return -(-x // m) * m


def _pick_tile(total, cap):
    """Largest multiple-of-128 divisor of `total` that is <= cap (>=128)."""
    t = min(total, cap)
    t -= t % 128
    t = max(t, 128)
    while total % t:
        t -= 128
    return t


# ---------------------------------------------------------------------------
# Kernel 1: simplified RGB backbone, tiled over the patch axis P
#   conv1 (im2col matmul) -> ReLU -> global average pool -> fc to MIDFC
# ---------------------------------------------------------------------------
def backbone_kernel(patches_ref, wconv_ref, wfc_ref, bfc_ref, out_ref, acc_ref,
                    *, inv_p):
    # patches_ref: [B, TP, Kp] bf16   wconv_ref: [Kp, C1] bf16
    # wfc_ref:     [C1, MIDFC] bf16   bfc_ref:   [1, MIDFC] f32
    # out_ref:     [B, MIDFC]  f32    acc_ref:   [B, C1]   f32 (scratch)
    p = pl.program_id(0)

    @pl.when(p == 0)
    def _():
        acc_ref[...] = jnp.zeros_like(acc_ref)

    B, TP, Kp = patches_ref.shape
    # One well-shaped GEMM with M = B*TP (fills the MXU rows).
    z = jnp.dot(patches_ref[...].reshape(B * TP, Kp), wconv_ref[...],
                preferred_element_type=jnp.float32)          # [B*TP, C1] (MXU)
    z = jnp.maximum(z, 0.0)                                   # ReLU (VPU)
    acc_ref[...] += z.reshape(B, TP, -1).sum(axis=1)          # pooled partial sum

    @pl.when(p == pl.num_programs(0) - 1)
    def _():
        pooled = (acc_ref[...] * inv_p).astype(jnp.bfloat16)  # global avg pool
        out_ref[...] = (jnp.dot(pooled, wfc_ref[...],
                                preferred_element_type=jnp.float32)
                        + bfc_ref[...])


# ---------------------------------------------------------------------------
# Kernel 2: heads GEMM1 fused across x/y/z (BN folded), tiled over N = 3*Hd
#   h_all = ReLU(feature @ W1cat + b1cat)
# ---------------------------------------------------------------------------
def gemm1_kernel(x_ref, w1_ref, b1_ref, h_ref):
    # x_ref: [B, D] f32   w1_ref: [D, TN1] bf16   b1_ref: [1, TN1] f32
    x = x_ref[...].astype(jnp.bfloat16)
    h = jnp.dot(x, w1_ref[...], preferred_element_type=jnp.float32) + b1_ref[...]
    h_ref[...] = jnp.maximum(h, 0.0).astype(h_ref.dtype)


# ---------------------------------------------------------------------------
# Kernel 3: heads GEMM2, grid = (O-tiles, head, Hd-tiles["arbitrary"])
#   y[head] = h_all[head] @ W2[head] + b2[head], streamed W2 tiles + accumulator
# ---------------------------------------------------------------------------
def gemm2_kernel(h_ref, w2_ref, b2_ref, out_ref, acc_ref):
    # h_ref:  [B, THd] bf16   w2_ref: [1, THd, TO] bf16
    # b2_ref: [1, 1, TO] f32  out_ref: [1, B, TO] f32  acc_ref: [B, TO] f32
    k = pl.program_id(2)

    @pl.when(k == 0)
    def _():
        acc_ref[...] = jnp.zeros_like(acc_ref)

    acc_ref[...] += jnp.dot(h_ref[...], w2_ref[0],
                            preferred_element_type=jnp.float32)

    @pl.when(k == pl.num_programs(2) - 1)
    def _():
        out_ref[0] = acc_ref[...] + b2_ref[0]


# ---------------------------------------------------------------------------
# Glue: im2col (reshape-only data plumbing; conv math is in-kernel)
# ---------------------------------------------------------------------------
def im2col(x, kh, kw, stride, pad, k_pad, tile_p):
    B, C, H, W = x.shape
    xp = jnp.pad(x, ((0, 0), (0, 0), (pad, pad), (pad, pad)))
    Ho = (H + 2 * pad - kh) // stride + 1
    Wo = (W + 2 * pad - kw) // stride + 1
    cols = []
    for i in range(kh):
        for j in range(kw):
            cols.append(xp[:, :, i:i + stride * Ho:stride, j:j + stride * Wo:stride])
    p = jnp.stack(cols, axis=2)                        # [B, C, kh*kw, Ho, Wo]
    p = p.transpose(0, 3, 4, 1, 2).reshape(B, Ho * Wo, C * kh * kw)
    P = Ho * Wo
    P_pad = _round_up(P, tile_p)
    # Zero-padded rows/cols contribute 0 after conv+ReLU; mean uses true P.
    p = jnp.pad(p, ((0, 0), (0, P_pad - P), (0, k_pad - C * kh * kw)))
    return p.astype(jnp.bfloat16), P                   # K ordered (C, kh, kw)


def init_params(key, midfc=MIDFC, conv_out=CONV_OUT, cin=3, k=KSIZE):
    ks = jax.random.split(key, 8)
    hid = 5 * midfc
    out_dim = 5 * midfc     # real model: 1024 * 5
    wconv4d = 0.05 * jax.random.normal(ks[0], (conv_out, cin, k, k), jnp.float32)
    return dict(
        wconv=wconv4d.reshape(conv_out, cin * k * k).T,               # [K, C1]
        wfc=0.05 * jax.random.normal(ks[1], (conv_out, midfc), jnp.float32),
        bfc=0.01 * jax.random.normal(ks[2], (1, midfc), jnp.float32),
        w1=0.05 * jax.random.normal(ks[3], (3, midfc, hid), jnp.float32),
        b1=0.01 * jax.random.normal(ks[4], (3, 1, hid), jnp.float32),
        gamma=jnp.ones((3, 1, hid), jnp.float32),                      # BN defaults
        beta=jnp.zeros((3, 1, hid), jnp.float32),
        rm=jnp.zeros((3, 1, hid), jnp.float32),
        rv=jnp.ones((3, 1, hid), jnp.float32),
        w2=0.02 * jax.random.normal(ks[5], (3, hid, out_dim), jnp.float32),
        b2=0.01 * jax.random.normal(ks[6], (3, 1, out_dim), jnp.float32),
    )


def prepare_params(params):
    """One-time inference prep: fold BN into Linear1, cast weights to bf16,
    concat W1 across heads, pad the im2col contraction dim to 128-aligned."""
    eps = 1e-5
    inv = jax.lax.rsqrt(params["rv"] + eps)                  # [3, 1, Hd]
    scale = params["gamma"] * inv
    w1f = params["w1"] * scale                               # [3, D, Hd]
    b1f = (params["b1"] - params["rm"]) * scale + params["beta"]
    D, Hd = params["w1"].shape[1], params["w1"].shape[2]

    K, _ = params["wconv"].shape
    k_pad = _round_up(K, 128)
    wconv_p = jnp.pad(params["wconv"], ((0, k_pad - K), (0, 0)))

    return dict(
        wconv=wconv_p.astype(jnp.bfloat16),                               # [Kp, C1]
        wfc=params["wfc"].astype(jnp.bfloat16),
        bfc=params["bfc"].astype(jnp.float32),
        w1cat=jnp.transpose(w1f, (1, 0, 2)).reshape(D, 3 * Hd).astype(jnp.bfloat16),
        b1cat=b1f.reshape(1, 3 * Hd).astype(jnp.float32),
        w2=params["w2"].astype(jnp.bfloat16),                             # [3, Hd, O]
        b2=params["b2"].astype(jnp.float32),                              # [3, 1, O]
    )


def baseline_hand_forward(prepped, img, hand=None, LEGHTN=None, cfg=None):
    # hand / LEGHTN / cfg are unused in the PyTorch forward.
    x = img[:, -1].astype(jnp.float32)                 # [B, 3, H, W]
    B, _, H, W = x.shape
    K_pad, C1 = prepped["wconv"].shape
    midfc = prepped["wfc"].shape[1]

    # Adaptive patch tile: large enough to amortize per-step overhead at real
    # scale, no bigger than the (128-aligned) true patch count at small scale.
    Ho = (H + 2 * PAD - KSIZE) // STRIDE + 1
    Wo = (W + 2 * PAD - KSIZE) // STRIDE + 1
    tile_p = min(MAX_TILE_P, _round_up(Ho * Wo, 128))

    patches, P_true = im2col(x, KSIZE, KSIZE, STRIDE, PAD, K_pad, tile_p)
    n_p = patches.shape[1] // tile_p

    # --- backbone: tiled over P (reduction), pooled-sum accumulator ----------
    rgb_feature = pl.pallas_call(
        functools.partial(backbone_kernel, inv_p=1.0 / float(P_true)),
        out_shape=jax.ShapeDtypeStruct((B, midfc), jnp.float32),
        grid=(n_p,),
        in_specs=[
            pl.BlockSpec((B, tile_p, K_pad), lambda p: (0, p, 0)),
            pl.BlockSpec((K_pad, C1), lambda p: (0, 0)),
            pl.BlockSpec((C1, midfc), lambda p: (0, 0)),
            pl.BlockSpec((1, midfc), lambda p: (0, 0)),
        ],
        out_specs=pl.BlockSpec((B, midfc), lambda p: (0, 0)),
        scratch_shapes=[pltpu.VMEM((B, C1), jnp.float32)],
        compiler_params=pltpu.CompilerParams(
            dimension_semantics=("arbitrary",),
            vmem_limit_bytes=VMEM_LIMIT),
    )(patches, prepped["wconv"], prepped["wfc"], prepped["bfc"])

    # --- heads GEMM1 (fused x/y/z, BN folded), tiled over N = 3*Hd -----------
    D = midfc
    N1 = prepped["w1cat"].shape[1]                     # 3 * Hd
    Hd = prepped["w2"].shape[1]
    O = prepped["w2"].shape[2]
    TN1 = _pick_tile(N1, 2048)
    n1 = N1 // TN1

    h_all = pl.pallas_call(
        gemm1_kernel,
        out_shape=jax.ShapeDtypeStruct((B, N1), jnp.bfloat16),
        grid=(n1,),
        in_specs=[
            pl.BlockSpec((B, D), lambda j: (0, 0)),
            pl.BlockSpec((D, TN1), lambda j: (0, j)),
            pl.BlockSpec((1, TN1), lambda j: (0, j)),
        ],
        out_specs=pl.BlockSpec((B, TN1), lambda j: (0, j)),
        compiler_params=pltpu.CompilerParams(
            dimension_semantics=("parallel",),
            vmem_limit_bytes=VMEM_LIMIT),
    )(rgb_feature, prepped["w1cat"], prepped["b1cat"])

    # --- heads GEMM2: stream W2 tiles, accumulate over Hd --------------------
    THd = _pick_tile(Hd, 2048)
    TO = _pick_tile(O, 2560)                           # lane-dense output tile
    n_h = Hd // THd
    n_o = O // TO

    heads = pl.pallas_call(
        gemm2_kernel,
        out_shape=jax.ShapeDtypeStruct((3, B, O), jnp.float32),
        grid=(n_o, 3, n_h),
        in_specs=[
            pl.BlockSpec((B, THd), lambda o, h, k: (0, h * n_h + k)),   # h_all slice
            pl.BlockSpec((1, THd, TO), lambda o, h, k: (h, k, o)),      # W2 tile
            pl.BlockSpec((1, 1, TO), lambda o, h, k: (h, 0, o)),        # b2 tile
        ],
        out_specs=pl.BlockSpec((1, B, TO), lambda o, h, k: (h, 0, o)),
        scratch_shapes=[pltpu.VMEM((B, TO), jnp.float32)],
        compiler_params=pltpu.CompilerParams(
            dimension_semantics=("parallel", "arbitrary", "arbitrary"),
            vmem_limit_bytes=VMEM_LIMIT),
    )(h_all, prepped["w2"], prepped["b2"])

    # torch.cat((x.unsqueeze(1), y.unsqueeze(1), z.unsqueeze(1)), dim=1)
    res = jnp.transpose(heads, (1, 0, 2))              # [B, 3, 5*midfc]
    return [res]


if __name__ == "__main__":
    key = jax.random.PRNGKey(0)
    pkey, ikey = jax.random.split(key)
    params = init_params(pkey)
    prepped = prepare_params(params)                   # one-time inference prep

    B, T, C, H, W = 2, 3, 3, 16, 16
    img = jax.random.normal(ikey, (B, T, C, H, W), jnp.float32)
    hand = jnp.zeros((B, 8, 21, 3), jnp.float32)       # unused in forward
    LEGHTN = jnp.full((B,), 8, jnp.int32)              # unused in forward

    out = baseline_hand_forward(prepped, img, hand, LEGHTN, cfg=None)
    res = jax.block_until_ready(out[0])
    assert res.shape == (B, 3, 5 * MIDFC) and res.dtype == jnp.float32
    assert bool(jnp.all(jnp.isfinite(res)))
    print("KERNEL_OK")
</pallas_src>

<mosaic_0001>
module attributes {stable_mosaic.version = 11 : i64} {
  func.func @backbone_kernel(%arg0: i32, %arg1: memref<2x128x256xbf16, #tpu.memory_space<vmem>>, %arg2: memref<256x64xbf16, #tpu.memory_space<vmem>>, %arg3: memref<64x128xbf16, #tpu.memory_space<vmem>>, %arg4: memref<1x128xf32, #tpu.memory_space<vmem>>, %arg5: memref<2x128xf32, #tpu.memory_space<vmem>>, %arg6: memref<2x64xf32, #tpu.memory_space<vmem>>) attributes {dimension_semantics = [#tpu.dimension_semantics<arbitrary>], iteration_bounds = array<i64: 1>, scalar_prefetch = 0 : i64, scratch_operands = 1 : i64, tpu.core_type = #tpu.core_type<tc>, window_params = [{transform_indices = @transform_0, window_bounds = array<i64: 2, 128, 256>}, {pipeline_mode = #tpu.pipeline_mode<synchronous>, transform_indices = @transform_1, window_bounds = array<i64: 256, 64>}, {pipeline_mode = #tpu.pipeline_mode<synchronous>, transform_indices = @transform_2, window_bounds = array<i64: 64, 128>}, {pipeline_mode = #tpu.pipeline_mode<synchronous>, transform_indices = @transform_3, window_bounds = array<i64: 1, 128>}, {pipeline_mode = #tpu.pipeline_mode<synchronous>, transform_indices = @transform_4, window_bounds = array<i64: 2, 128>}]} {
    %c0_i32 = arith.constant 0 : i32
    %0 = arith.cmpi eq, %arg0, %c0_i32 : i32
    %1 = arith.extui %0 : i1 to i32
    %c0_i32_0 = arith.constant 0 : i32
    %2 = arith.cmpi ne, %1, %c0_i32_0 : i32
    scf.if %2 {
      %cst_13 = arith.constant 0.000000e+00 : f32
      %17 = vector.broadcast %cst_13 : f32 to vector<2x64xf32>
      %c0_14 = arith.constant 0 : index
      %c0_15 = arith.constant 0 : index
      %18 = vector.load %arg6[%c0_14, %c0_15] : memref<2x64xf32, #tpu.memory_space<vmem>>, vector<2x64xf32>
      tpu.vector_store %arg6[%c0_14, %c0_15], %17 {strides = array<i32>} : memref<2x64xf32, #tpu.memory_space<vmem>>, vector<2x64xf32>,
    } else {
    }
    %c0 = arith.constant 0 : index
    %c0_1 = arith.constant 0 : index
    %c0_2 = arith.constant 0 : index
    %3 = vector.load %arg1[%c0, %c0_1, %c0_2] : memref<2x128x256xbf16, #tpu.memory_space<vmem>>, vector<2x128x256xbf16>
    %4 = vector.shape_cast %3 : vector<2x128x256xbf16> to vector<256x256xbf16>
    %c0_3 = arith.constant 0 : index
    %c0_4 = arith.constant 0 : index
    %5 = vector.load %arg2[%c0_3, %c0_4] : memref<256x64xbf16, #tpu.memory_space<vmem>>, vector<256x64xbf16>
    %cst = arith.constant dense<0.000000e+00> : vector<256x64xf32>
    %6 = tpu.matmul %4, %5, %cst {dimension_numbers = #tpu.dot_dimension_numbers<[1], [0], [0], [1], [0, 0, 1, 1], [], []>} : vector<256x256xbf16>, vector<256x64xbf16>, vector<256x64xf32> -> vector<256x64xf32>
    %cst_5 = arith.constant 0.000000e+00 : f32
    %7 = vector.broadcast %cst_5 : f32 to vector<256x64xf32>
    %8 = arith.maximumf %6, %7 : vector<256x64xf32>
    %c0_6 = arith.constant 0 : index
    %c0_7 = arith.constant 0 : index
    %9 = vector.load %arg6[%c0_6, %c0_7] : memref<2x64xf32, #tpu.memory_space<vmem>>, vector<2x64xf32>
    %10 = vector.shape_cast %8 : vector<256x64xf32> to vector<2x128x64xf32>
    %cst_8 = arith.constant dense<0.000000e+00> : vector<2x64xf32>
    %11 = vector.multi_reduction <add>, %10, %cst_8 [1] : vector<2x128x64xf32> to vector<2x64xf32>
    %12 = arith.addf %9, %11 : vector<2x64xf32>
    %c0_9 = arith.constant 0 : index
    %c0_10 = arith.constant 0 : index
    %13 = vector.load %arg6[%c0_9, %c0_10] : memref<2x64xf32, #tpu.memory_space<vmem>>, vector<2x64xf32>
    tpu.vector_store %arg6[%c0_9, %c0_10], %12 {strides = array<i32>} : memref<2x64xf32, #tpu.memory_space<vmem>>, vector<2x64xf32>,
    %c0_i32_11 = arith.constant 0 : i32
    %14 = arith.cmpi eq, %arg0, %c0_i32_11 : i32
    %15 = arith.extui %14 : i1 to i32
    %c0_i32_12 = arith.constant 0 : i32
    %16 = arith.cmpi ne, %15, %c0_i32_12 : i32
    scf.if %16 {
      %c0_13 = arith.constant 0 : index
      %c0_14 = arith.constant 0 : index
      %17 = vector.load %arg6[%c0_13, %c0_14] : memref<2x64xf32, #tpu.memory_space<vmem>>, vector<2x64xf32>
      %cst_15 = arith.constant 1.562500e-02 : f32
      %18 = vector.broadcast %cst_15 : f32 to vector<2x64xf32>
      %19 = arith.mulf %17, %18 : vector<2x64xf32>
      %20 = arith.truncf %19 : vector<2x64xf32> to vector<2x64xbf16>
      %c0_16 = arith.constant 0 : index
      %c0_17 = arith.constant 0 : index
      %21 = vector.load %arg3[%c0_16, %c0_17] : memref<64x128xbf16, #tpu.memory_space<vmem>>, vector<64x128xbf16>
      %cst_18 = arith.constant dense<0.000000e+00> : vector<2x128xf32>
      %22 = tpu.matmul %20, %21, %cst_18 {dimension_numbers = #tpu.dot_dimension_numbers<[1], [0], [0], [1], [0, 0, 1, 1], [], []>} : vector<2x64xbf16>, vector<64x128xbf16>, vector<2x128xf32> -> vector<2x128xf32>
      %c0_19 = arith.constant 0 : index
      %c0_20 = arith.constant 0 : index
      %23 = vector.load %arg4[%c0_19, %c0_20] : memref<1x128xf32, #tpu.memory_space<vmem>>, vector<1x128xf32>
      %24 = vector.broadcast %23 : vector<1x128xf32> to vector<2x128xf32>
      %25 = arith.addf %22, %24 : vector<2x128xf32>
      %c0_21 = arith.constant 0 : index
      %c0_22 = arith.constant 0 : index
      %26 = vector.load %arg5[%c0_21, %c0_22] : memref<2x128xf32, #tpu.memory_space<vmem>>, vector<2x128xf32>
      tpu.vector_store %arg5[%c0_21, %c0_22], %25 {strides = array<i32>} : memref<2x128xf32, #tpu.memory_space<vmem>>, vector<2x128xf32>,
    } else {
    }
    return
  }
  func.func @transform_0(%arg0: i32) -> (i32, i32, i32) {
    %c0_i32 = arith.constant 0 : i32
    %c0_i32_0 = arith.constant 0 : i32
    %c0_i32_1 = arith.constant 0 : i32
    return %c0_i32, %arg0, %c0_i32_0 : i32, i32, i32
  }
  func.func @transform_1(%arg0: i32) -> (i32, i32) {
    %c0_i32 = arith.constant 0 : i32
    %c0_i32_0 = arith.constant 0 : i32
    %c0_i32_1 = arith.constant 0 : i32
    return %c0_i32, %c0_i32_0 : i32, i32
  }
  func.func @transform_2(%arg0: i32) -> (i32, i32) {
    %c0_i32 = arith.constant 0 : i32
    %c0_i32_0 = arith.constant 0 : i32
    %c0_i32_1 = arith.constant 0 : i32
    return %c0_i32, %c0_i32_0 : i32, i32
  }
  func.func @transform_3(%arg0: i32) -> (i32, i32) {
    %c0_i32 = arith.constant 0 : i32
    %c0_i32_0 = arith.constant 0 : i32
    %c0_i32_1 = arith.constant 0 : i32
    return %c0_i32, %c0_i32_0 : i32, i32
  }
  func.func @transform_4(%arg0: i32) -> (i32, i32) {
    %c0_i32 = arith.constant 0 : i32
    %c0_i32_0 = arith.constant 0 : i32
    %c0_i32_1 = arith.constant 0 : i32
    return %c0_i32, %c0_i32_0 : i32, i32
  }
}

</mosaic_0001>

<llo_original>
// kernel: tpu_custom_call.1
$region0: #{tpu_custom_call.1}
  #allocation0 [shape = 'u32[]', space=smem, size = 0x4, offset = 0x4, fixed_abs, tag = 'smem constant byte address 0x4 - core index']
  #allocation1 [shape = 'u32[72,128]{1,0:T(1,128)}', space=vmem, size = 0x9000, scoped, tag = 'internal scratch']
  #allocation2 [shape = 'f32[2,64]{1,0:T(2,128)}', space=vmem, size = 0x400, scoped, tag = 'scratch operand']
  %s0 = inlined_call_operand.hbm [shape: bf16[2,128,256], index: 0, kind: input, shape index: {}]
  %s1 = inlined_call_operand.vmem [shape: bf16[256,64], index: 1, kind: input, shape index: {}]
  %s2 = inlined_call_operand.vmem [shape: bf16[64,128], index: 2, kind: input, shape index: {}]
  %s3 = inlined_call_operand.vmem [shape: f32[1,128], index: 3, kind: input, shape index: {}]
  %s4 = inlined_call_operand.hbm [shape: f32[2,128], index: 4, kind: output, shape index: {}]
  %s5 = sld [smem:[#allocation0]]
  $region38: #{tpu_custom_call.1} parent=0
    _
  %s7 = ssub.s32 1, %s5
  %s8 = scalar_select 0, %s7, %s5
  $region1: #{tpu_custom_call.1} parent=0
    #allocation3 [shape = 'u8[131072]{0}', space=vmem, size = 0x20000, scoped, tag = 'input window, operand 0, single buffered']
    #allocation4 [shape = 's32[1]{0}', space=sflag, size = 0x4, scoped, tag = 'scoped memory for tpu_custom_call.1']
    #allocation5 [shape = 's32[1]{0}', space=sflag, size = 0x4, scoped, tag = 'scoped memory for tpu_custom_call.1']
    #allocation6 [shape = 'u8[1024]{0}', space=vmem, size = 0x400, scoped, tag = 'output window, operand 0, single buffered']
    %9 = vsyncpa [#allocation4], 0
    %10 = vsyncpa [#allocation5], 0
    // Predicated region
    $region2: #{tpu_custom_call.1} parent=1 // pred_check
      _
    $region3: #{tpu_custom_call.1} parent=1 // pred_check_branch
      %12 = sbr.rel (0) target = $region5
    $region4: #{tpu_custom_call.1} parent=1 // pred_region
      %14 = vsyncadd [#allocation4], 0
      %s15 = sshll.u32 %s0, 4
      %s16 = int_to_ptr.hbm [resolvable:$true] %s15
      %s17 = sshll.u32 [#allocation3], 4
      %s18 = int_to_ptr.vmem [resolvable:$true] %s17
      %23 = dma.hbm_to_vmem [thread:$0]  %s16, 4096, %s18, [#allocation4], 128, 128, 8
    $region5: #{tpu_custom_call.1} parent=1 // pred_fallthru
      _
    // Predicated region
    $region6: #{tpu_custom_call.1} parent=1 // pred_check
      _
    $region7: #{tpu_custom_call.1} parent=1 // pred_check_branch
      %25 = sbr.rel (0) target = $region9
    $region8: #{tpu_custom_call.1} parent=1 // pred_region
      _
    $region9: #{tpu_custom_call.1} parent=1 // pred_fallthru
      _
    // Predicated region
    $region10: #{tpu_custom_call.1} parent=1 // pred_check
      _
    $region11: #{tpu_custom_call.1} parent=1 // pred_check_branch
      %27 = sbr.rel (0) target = $region13
    $region12: #{tpu_custom_call.1} parent=1 // pred_region
      _
    $region13: #{tpu_custom_call.1} parent=1 // pred_fallthru
      _
    // Predicated region
    $region14: #{tpu_custom_call.1} parent=1 // pred_check
      _
    $region15: #{tpu_custom_call.1} parent=1 // pred_check_branch
      %29 = sbr.rel (0) target = $region17
    $region16: #{tpu_custom_call.1} parent=1 // pred_region
      _
    $region17: #{tpu_custom_call.1} parent=1 // pred_fallthru
      _
    // Predicated region
    $region18: #{tpu_custom_call.1} parent=1 // pred_check
      _
    $region19: #{tpu_custom_call.1} parent=1 // pred_check_branch
      %31 = sbr.rel (0) target = $region21
    $region20: #{tpu_custom_call.1} parent=1 // pred_region
      %33 = dma.done [#allocation4], 4096
    $region21: #{tpu_custom_call.1} parent=1 // pred_fallthru
      _
    %p35 = scmp.eq.s32.totalorder 0, 0
    // Predicated region
    $region22: #{tpu_custom_call.1} parent=1 // pred_check
      %p36 = pneg %p35
    $region23: #{tpu_custom_call.1} parent=1 // pred_check_branch
      %38 = sbr.rel (%p36) target = $region25
    $region24: #{tpu_custom_call.1} parent=1 // pred_region
      %vm39 = vcmask 517120
      %40 = vst.msk [vmem:[#allocation2] sm:$0x3] %vm39, 0.0
    $region25: #{tpu_custom_call.1} parent=1 // pred_fallthru
      _
    %v41 = vld [vmem:[#allocation3] sm:$0xff]
    %v42 = vld [vmem:[#allocation3 + $0x8] sm:$0xff]
    %v43 = vld [vmem:[#allocation3 + $0x10] sm:$0xff]
    %v44 = vld [vmem:[#allocation3 + $0x18] sm:$0xff]
    %v45 = vld [vmem:[#allocation3 + $0x20] sm:$0xff]
    %v46 = vld [vmem:[#allocation3 + $0x28] sm:$0xff]
    %v47 = vld [vmem:[#allocation3 + $0x30] sm:$0xff]
    %v48 = vld [vmem:[#allocation3 + $0x38] sm:$0xff]
    %v49 = vld [vmem:[#allocation3 + $0x40] sm:$0xff]
    %v50 = vld [vmem:[#allocation3 + $0x48] sm:$0xff]
    %v51 = vld [vmem:[#allocation3 + $0x50] sm:$0xff]
    %v52 = vld [vmem:[#allocation3 + $0x58] sm:$0xff]
    %v53 = vld [vmem:[#allocation3 + $0x60] sm:$0xff]
    %v54 = vld [vmem:[#allocation3 + $0x68] sm:$0xff]
    %v55 = vld [vmem:[#allocation3 + $0x70] sm:$0xff]
    %v56 = vld [vmem:[#allocation3 + $0x78] sm:$0xff]
    %v57 = vld [vmem:[#allocation3 + $0x80] sm:$0xff]
    %v58 = vld [vmem:[#allocation3 + $0x88] sm:$0xff]
    %v59 = vld [vmem:[#allocation3 + $0x90] sm:$0xff]
    %v60 = vld [vmem:[#allocation3 + $0x98] sm:$0xff]
    %v61 = vld [vmem:[#allocation3 + $0xa0] sm:$0xff]
    %v62 = vld [vmem:[#allocation3 + $0xa8] sm:$0xff]
    %v63 = vld [vmem:[#allocation3 + $0xb0] sm:$0xff]
    %v64 = vld [vmem:[#allocation3 + $0xb8] sm:$0xff]
    %v65 = vld [vmem:[#allocation3 + $0xc0] sm:$0xff]
    %v66 = vld [vmem:[#allocation3 + $0xc8] sm:$0xff]
    %v67 = vld [vmem:[#allocation3 + $0xd0] sm:$0xff]
    %v68 = vld [vmem:[#allocation3 + $0xd8] sm:$0xff]
    %v69 = vld [vmem:[#allocation3 + $0xe0] sm:$0xff]
    %v70 = vld [vmem:[#allocation3 + $0xe8] sm:$0xff]
    %v71 = vld [vmem:[#allocation3 + $0xf0] sm:$0xff]
    %v72 = vld [vmem:[#allocation3 + $0xf8] sm:$0xff]
    %v73 = vld [vmem:[%s1] sm:$0xf]
    %v74 = vld [vmem:[%s1 + $0x4] sm:$0xf]
    %v75 = vld [vmem:[%s1 + $0x8] sm:$0xf]
    %v76 = vld [vmem:[%s1 + $0xc] sm:$0xf]
    %v77 = vld [vmem:[%s1 + $0x10] sm:$0xf]
    %v78 = vld [vmem:[%s1 + $0x14] sm:$0xf]
    %v79 = vld [vmem:[%s1 + $0x18] sm:$0xf]
    %v80 = vld [vmem:[%s1 + $0x1c] sm:$0xf]
    %v81 = vld [vmem:[%s1 + $0x20] sm:$0xf]
    %v82 = vld [vmem:[%s1 + $0x24] sm:$0xf]
    %v83 = vld [vmem:[%s1 + $0x28] sm:$0xf]
    %v84 = vld [vmem:[%s1 + $0x2c] sm:$0xf]
    %v85 = vld [vmem:[%s1 + $0x30] sm:$0xf]
    %v86 = vld [vmem:[%s1 + $0x34] sm:$0xf]
    %v87 = vld [vmem:[%s1 + $0x38] sm:$0xf]
    %v88 = vld [vmem:[%s1 + $0x3c] sm:$0xf]
    %v89 = vld [vmem:[%s1 + $0x40] sm:$0xf]
    %v90 = vld [vmem:[%s1 + $0x44] sm:$0xf]
    %v91 = vld [vmem:[%s1 + $0x48] sm:$0xf]
    %v92 = vld [vmem:[%s1 + $0x4c] sm:$0xf]
    %v93 = vld [vmem:[%s1 + $0x50] sm:$0xf]
    %v94 = vld [vmem:[%s1 + $0x54] sm:$0xf]
    %v95 = vld [vmem:[%s1 + $0x58] sm:$0xf]
    %v96 = vld [vmem:[%s1 + $0x5c] sm:$0xf]
    %v97 = vld [vmem:[%s1 + $0x60] sm:$0xf]
    %v98 = vld [vmem:[%s1 + $0x64] sm:$0xf]
    %v99 = vld [vmem:[%s1 + $0x68] sm:$0xf]
    %v100 = vld [vmem:[%s1 + $0x6c] sm:$0xf]
    %v101 = vld [vmem:[%s1 + $0x70] sm:$0xf]
    %v102 = vld [vmem:[%s1 + $0x74] sm:$0xf]
    %v103 = vld [vmem:[%s1 + $0x78] sm:$0xf]
    %v104 = vld [vmem:[%s1 + $0x7c] sm:$0xf]
    %v137 = vunpack.c.l.b16 %v41
    %v138 = vunpack.c.h.b16 %v41
    %v139 = vunpack.c.l.b16 %v42
    %v140 = vunpack.c.h.b16 %v42
    %v141 = vunpack.c.l.b16 %v43
    %v142 = vunpack.c.h.b16 %v43
    %v143 = vunpack.c.l.b16 %v44
    %v144 = vunpack.c.h.b16 %v44
    %v145 = vunpack.c.l.b16 %v45
    %v146 = vunpack.c.h.b16 %v45
    %v147 = vunpack.c.l.b16 %v46
    %v148 = vunpack.c.h.b16 %v46
    %v149 = vunpack.c.l.b16 %v47
    %v150 = vunpack.c.h.b16 %v47
    %v151 = vunpack.c.l.b16 %v48
    %v152 = vunpack.c.h.b16 %v48
    %v153 = vunpack.c.l.b16 %v49
    %v154 = vunpack.c.h.b16 %v49
    %v155 = vunpack.c.l.b16 %v50
    %v156 = vunpack.c.h.b16 %v50
    %v157 = vunpack.c.l.b16 %v51
    %v158 = vunpack.c.h.b16 %v51
    %v159 = vunpack.c.l.b16 %v52
    %v160 = vunpack.c.h.b16 %v52
    %v161 = vunpack.c.l.b16 %v53
    %v162 = vunpack.c.h.b16 %v53
    %v163 = vunpack.c.l.b16 %v54
    %v164 = vunpack.c.h.b16 %v54
    %v165 = vunpack.c.l.b16 %v55
    %v166 = vunpack.c.h.b16 %v55
    %v167 = vunpack.c.l.b16 %v56
    %v168 = vunpack.c.h.b16 %v56
    %v169 = vunpack.c.l.b16 %v57
    %v170 = vunpack.c.h.b16 %v57
    %v171 = vunpack.c.l.b16 %v58
    %v172 = vunpack.c.h.b16 %v58
    %v173 = vunpack.c.l.b16 %v59
    %v174 = vunpack.c.h.b16 %v59
    %v175 = vunpack.c.l.b16 %v60
    %v176 = vunpack.c.h.b16 %v60
    %v177 = vunpack.c.l.b16 %v61
    %v178 = vunpack.c.h.b16 %v61
    %v179 = vunpack.c.l.b16 %v62
    %v180 = vunpack.c.h.b16 %v62
    %v181 = vunpack.c.l.b16 %v63
    %v182 = vunpack.c.h.b16 %v63
    %v183 = vunpack.c.l.b16 %v64
    %v184 = vunpack.c.h.b16 %v64
    %v185 = vunpack.c.l.b16 %v65
    %v186 = vunpack.c.h.b16 %v65
    %v187 = vunpack.c.l.b16 %v66
    %v188 = vunpack.c.h.b16 %v66
    %v189 = vunpack.c.l.b16 %v67
    %v190 = vunpack.c.h.b16 %v67
    %v191 = vunpack.c.l.b16 %v68
    %v192 = vunpack.c.h.b16 %v68
    %v193 = vunpack.c.l.b16 %v69
    %v194 = vunpack.c.h.b16 %v69
    %v195 = vunpack.c.l.b16 %v70
    %v196 = vunpack.c.h.b16 %v70
    %v197 = vunpack.c.l.b16 %v71
    %v198 = vunpack.c.h.b16 %v71
    %v199 = vunpack.c.l.b16 %v72
    %v200 = vunpack.c.h.b16 %v72
    %v201 = vpack.c.b16 %v139, %v137
    %v202 = vpack.c.b16 %v140, %v138
    %v203 = vpack.c.b16 %v143, %v141
    %v204 = vpack.c.b16 %v144, %v142
    %v205 = vpack.c.b16 %v147, %v145
    %v206 = vpack.c.b16 %v148, %v146
    %v207 = vpack.c.b16 %v151, %v149
    %v208 = vpack.c.b16 %v152, %v150
    %v209 = vpack.c.b16 %v155, %v153
    %v210 = vpack.c.b16 %v156, %v154
    %v211 = vpack.c.b16 %v159, %v157
    %v212 = vpack.c.b16 %v160, %v158
    %v213 = vpack.c.b16 %v163, %v161
    %v214 = vpack.c.b16 %v164, %v162
    %v215 = vpack.c.b16 %v167, %v165
    %v216 = vpack.c.b16 %v168, %v166
    %v217 = vpack.c.b16 %v171, %v169
    %v218 = vpack.c.b16 %v172, %v170
    %v219 = vpack.c.b16 %v175, %v173
    %v220 = vpack.c.b16 %v176, %v174
    %v221 = vpack.c.b16 %v179, %v177
    %v222 = vpack.c.b16 %v180, %v178
    %v223 = vpack.c.b16 %v183, %v181
    %v224 = vpack.c.b16 %v184, %v182
    %v225 = vpack.c.b16 %v187, %v185
    %v226 = vpack.c.b16 %v188, %v186
    %v227 = vpack.c.b16 %v191, %v189
    %v228 = vpack.c.b16 %v192, %v190
    %v229 = vpack.c.b16 %v195, %v193
    %v230 = vpack.c.b16 %v196, %v194
    %v231 = vpack.c.b16 %v199, %v197
    %v232 = vpack.c.b16 %v200, %v198
    %v297 = vunpack.c.l.b16 %v73
    %v298 = vunpack.c.l.b16 %v74
    %v299 = vunpack.c.l.b16 %v75
    %v300 = vunpack.c.l.b16 %v76
    %v301 = vunpack.c.l.b16 %v77
    %v302 = vunpack.c.l.b16 %v78
    %v303 = vunpack.c.l.b16 %v79
    %v304 = vunpack.c.l.b16 %v80
    %v305 = vunpack.c.l.b16 %v81
    %v306 = vunpack.c.l.b16 %v82
    %v307 = vunpack.c.l.b16 %v83
    %v308 = vunpack.c.l.b16 %v84
    %v309 = vunpack.c.l.b16 %v85
    %v310 = vunpack.c.l.b16 %v86
    %v311 = vunpack.c.l.b16 %v87
    %v312 = vunpack.c.l.b16 %v88
    %v313 = vunpack.c.l.b16 %v89
    %v314 = vunpack.c.l.b16 %v90
    %v315 = vunpack.c.l.b16 %v91
    %v316 = vunpack.c.l.b16 %v92
    %v317 = vunpack.c.l.b16 %v93
    %v318 = vunpack.c.l.b16 %v94
    %v319 = vunpack.c.l.b16 %v95
    %v320 = vunpack.c.l.b16 %v96
    %v321 = vunpack.c.l.b16 %v97
    %v322 = vunpack.c.l.b16 %v98
    %v323 = vunpack.c.l.b16 %v99
    %v324 = vunpack.c.l.b16 %v100
    %v325 = vunpack.c.l.b16 %v101
    %v326 = vunpack.c.l.b16 %v102
    %v327 = vunpack.c.l.b16 %v103
    %v328 = vunpack.c.l.b16 %v104
    %v329 = vpack.c.b16 %v298, %v297
    %v330 = vpack.c.b16 %v300, %v299
    %v331 = vpack.c.b16 %v302, %v301
    %v332 = vpack.c.b16 %v304, %v303
    %v333 = vpack.c.b16 %v306, %v305
    %v334 = vpack.c.b16 %v308, %v307
    %v335 = vpack.c.b16 %v310, %v309
    %v336 = vpack.c.b16 %v312, %v311
    %v337 = vpack.c.b16 %v314, %v313
    %v338 = vpack.c.b16 %v316, %v315
    %v339 = vpack.c.b16 %v318, %v317
    %v340 = vpack.c.b16 %v320, %v319
    %v341 = vpack.c.b16 %v322, %v321
    %v342 = vpack.c.b16 %v324, %v323
    %v343 = vpack.c.b16 %v326, %v325
    %v344 = vpack.c.b16 %v328, %v327
    %361 = vmatpush.bf16.msra.mxu0 %v336
    %362 = vmatpush.bf16.msra.mxu0 %v335
    %363 = vmatpush.bf16.msra.mxu0 %v334
    %364 = vmatpush.bf16.msra.mxu0 %v333
    %365 = vmatpush.bf16.msra.mxu0 %v332
    %366 = vmatpush.bf16.msra.mxu0 %v331
    %367 = vmatpush.bf16.msra.mxu0 %v330
    %368 = vmatpush.bf16.msra.mxu0 %v329
    %369 = vmatmul.bf16.gmra.mxu0 %v201
    %v370 = vpop.f32.mrf.mxu0
    %v371 = vadd.f32 0.0, %v370
    %v372 = vpop.f32.mrf.mxu0
    %v373 = vadd.f32 0.0, %v372
    %374 = vmatmul.bf16.gmra.mxu0 %v203
    %v375 = vpop.f32.mrf.mxu0
    %v376 = vadd.f32 0.0, %v375
    %v377 = vpop.f32.mrf.mxu0
    %v378 = vadd.f32 0.0, %v377
    %379 = vmatmul.bf16.gmra.mxu0 %v205
    %v380 = vpop.f32.mrf.mxu0
    %v381 = vadd.f32 0.0, %v380
    %v382 = vpop.f32.mrf.mxu0
    %v383 = vadd.f32 0.0, %v382
    %384 = vmatmul.bf16.gmra.mxu0 %v207
    %v385 = vpop.f32.mrf.mxu0
    %v386 = vadd.f32 0.0, %v385
    %v387 = vpop.f32.mrf.mxu0
    %v388 = vadd.f32 0.0, %v387
    %389 = vmatmul.bf16.gmra.mxu0 %v209
    %v390 = vpop.f32.mrf.mxu0
    %v391 = vadd.f32 0.0, %v390
    %v392 = vpop.f32.mrf.mxu0
    %v393 = vadd.f32 0.0, %v392
    %394 = vmatmul.bf16.gmra.mxu0 %v211
    %v395 = vpop.f32.mrf.mxu0
    %v396 = vadd.f32 0.0, %v395
    %v397 = vpop.f32.mrf.mxu0
    %v398 = vadd.f32 0.0, %v397
    %399 = vmatmul.bf16.gmra.mxu0 %v213
    %v400 = vpop.f32.mrf.mxu0
    %v401 = vadd.f32 0.0, %v400
    %v402 = vpop.f32.mrf.mxu0
    %v403 = vadd.f32 0.0, %v402
    %404 = vmatmul.bf16.gmra.mxu0 %v215
    %v405 = vpop.f32.mrf.mxu0
    %v406 = vadd.f32 0.0, %v405
    %v407 = vpop.f32.mrf.mxu0
    %v408 = vadd.f32 0.0, %v407
    %409 = vmatmul.bf16.gmra.mxu0 %v217
    %v410 = vpop.f32.mrf.mxu0
    %v411 = vadd.f32 0.0, %v410
    %v412 = vpop.f32.mrf.mxu0
    %v413 = vadd.f32 0.0, %v412
    %414 = vmatmul.bf16.gmra.mxu0 %v219
    %v415 = vpop.f32.mrf.mxu0
    %v416 = vadd.f32 0.0, %v415
    %v417 = vpop.f32.mrf.mxu0
    %v418 = vadd.f32 0.0, %v417
    %419 = vmatmul.bf16.gmra.mxu0 %v221
    %v420 = vpop.f32.mrf.mxu0
    %v421 = vadd.f32 0.0, %v420
    %v422 = vpop.f32.mrf.mxu0
    %v423 = vadd.f32 0.0, %v422
    %424 = vmatmul.bf16.gmra.mxu0 %v223
    %v425 = vpop.f32.mrf.mxu0
    %v426 = vadd.f32 0.0, %v425
    %v427 = vpop.f32.mrf.mxu0
    %v428 = vadd.f32 0.0, %v427
    %429 = vmatmul.bf16.gmra.mxu0 %v225
    %v430 = vpop.f32.mrf.mxu0
    %v431 = vadd.f32 0.0, %v430
    %v432 = vpop.f32.mrf.mxu0
    %v433 = vadd.f32 0.0, %v432
    %434 = vmatmul.bf16.gmra.mxu0 %v227
    %v435 = vpop.f32.mrf.mxu0
    %v436 = vadd.f32 0.0, %v435
    %v437 = vpop.f32.mrf.mxu0
    %v438 = vadd.f32 0.0, %v437
    %439 = vmatmul.bf16.gmra.mxu0 %v229
    %v440 = vpop.f32.mrf.mxu0
    %v441 = vadd.f32 0.0, %v440
    %v442 = vpop.f32.mrf.mxu0
    %v443 = vadd.f32 0.0, %v442
    %444 = vmatmul.bf16.gmra.mxu0 %v231
    %v445 = vpop.f32.mrf.mxu0
    %v446 = vadd.f32 0.0, %v445
    %v447 = vpop.f32.mrf.mxu0
    %v448 = vadd.f32 0.0, %v447
    %449 = vdwg.mxu0
    %450 = vmatpush.bf16.msra.mxu0 %v344
    %451 = vmatpush.bf16.msra.mxu0 %v343
    %452 = vmatpush.bf16.msra.mxu0 %v342
    %453 = vmatpush.bf16.msra.mxu0 %v341
    %454 = vmatpush.bf16.msra.mxu0 %v340
    %455 = vmatpush.bf16.msra.mxu0 %v339
    %456 = vmatpush.bf16.msra.mxu0 %v338
    %457 = vmatpush.bf16.msra.mxu0 %v337
    %458 = vmatmul.bf16.gmra.mxu0 %v202
    %v459 = vpop.f32.mrf.mxu0
    %v460 = vadd.f32 %v371, %v459
    %v461 = vpop.f32.mrf.mxu0
    %v462 = vadd.f32 %v373, %v461
    %463 = vmatmul.bf16.gmra.mxu0 %v204
    %v464 = vpop.f32.mrf.mxu0
    %v465 = vadd.f32 %v376, %v464
    %v466 = vpop.f32.mrf.mxu0
    %v467 = vadd.f32 %v378, %v466
    %468 = vmatmul.bf16.gmra.mxu0 %v206
    %v469 = vpop.f32.mrf.mxu0
    %v470 = vadd.f32 %v381, %v469
    %v471 = vpop.f32.mrf.mxu0
    %v472 = vadd.f32 %v383, %v471
    %473 = vmatmul.bf16.gmra.mxu0 %v208
    %v474 = vpop.f32.mrf.mxu0
    %v475 = vadd.f32 %v386, %v474
    %v476 = vpop.f32.mrf.mxu0
    %v477 = vadd.f32 %v388, %v476
    %478 = vmatmul.bf16.gmra.mxu0 %v210
    %v479 = vpop.f32.mrf.mxu0
    %v480 = vadd.f32 %v391, %v479
    %v481 = vpop.f32.mrf.mxu0
    %v482 = vadd.f32 %v393, %v481
    %483 = vmatmul.bf16.gmra.mxu0 %v212
    %v484 = vpop.f32.mrf.mxu0
    %v485 = vadd.f32 %v396, %v484
    %v486 = vpop.f32.mrf.mxu0
    %v487 = vadd.f32 %v398, %v486
    %488 = vmatmul.bf16.gmra.mxu0 %v214
    %v489 = vpop.f32.mrf.mxu0
    %v490 = vadd.f32 %v401, %v489
    %v491 = vpop.f32.mrf.mxu0
    %v492 = vadd.f32 %v403, %v491
    %493 = vmatmul.bf16.gmra.mxu0 %v216
    %v494 = vpop.f32.mrf.mxu0
    %v495 = vadd.f32 %v406, %v494
    %v496 = vpop.f32.mrf.mxu0
    %v497 = vadd.f32 %v408, %v496
    %498 = vmatmul.bf16.gmra.mxu0 %v218
    %v499 = vpop.f32.mrf.mxu0
    %v500 = vadd.f32 %v411, %v499
    %v501 = vpop.f32.mrf.mxu0
    %v502 = vadd.f32 %v413, %v501
    %503 = vmatmul.bf16.gmra.mxu0 %v220
    %v504 = vpop.f32.mrf.mxu0
    %v505 = vadd.f32 %v416, %v504
    %v506 = vpop.f32.mrf.mxu0
    %v507 = vadd.f32 %v418, %v506
    %508 = vmatmul.bf16.gmra.mxu0 %v222
    %v509 = vpop.f32.mrf.mxu0
    %v510 = vadd.f32 %v421, %v509
    %v511 = vpop.f32.mrf.mxu0
    %v512 = vadd.f32 %v423, %v511
    %513 = vmatmul.bf16.gmra.mxu0 %v224
    %v514 = vpop.f32.mrf.mxu0
    %v515 = vadd.f32 %v426, %v514
    %v516 = vpop.f32.mrf.mxu0
    %v517 = vadd.f32 %v428, %v516
    %518 = vmatmul.bf16.gmra.mxu0 %v226
    %v519 = vpop.f32.mrf.mxu0
    %v520 = vadd.f32 %v431, %v519
    %v521 = vpop.f32.mrf.mxu0
    %v522 = vadd.f32 %v433, %v521
    %523 = vmatmul.bf16.gmra.mxu0 %v228
    %v524 = vpop.f32.mrf.mxu0
    %v525 = vadd.f32 %v436, %v524
    %v526 = vpop.f32.mrf.mxu0
    %v527 = vadd.f32 %v438, %v526
    %528 = vmatmul.bf16.gmra.mxu0 %v230
    %v529 = vpop.f32.mrf.mxu0
    %v530 = vadd.f32 %v441, %v529
    %v531 = vpop.f32.mrf.mxu0
    %v532 = vadd.f32 %v443, %v531
    %533 = vmatmul.bf16.gmra.mxu0 %v232
    %v534 = vpop.f32.mrf.mxu0
    %v535 = vadd.f32 %v446, %v534
    %v536 = vpop.f32.mrf.mxu0
    %v537 = vadd.f32 %v448, %v536
    %538 = vdwg.mxu0
    %v539 = vmax.f32 %v460, 0.0
    %v540 = vmax.f32 %v462, 0.0
    %v541 = vmax.f32 %v465, 0.0
    %v542 = vmax.f32 %v467, 0.0
    %v543 = vmax.f32 %v470, 0.0
    %v544 = vmax.f32 %v472, 0.0
    %v545 = vmax.f32 %v475, 0.0
    %v546 = vmax.f32 %v477, 0.0
    %v547 = vmax.f32 %v480, 0.0
    %v548 = vmax.f32 %v482, 0.0
    %v549 = vmax.f32 %v485, 0.0
    %v550 = vmax.f32 %v487, 0.0
    %v551 = vmax.f32 %v490, 0.0
    %v552 = vmax.f32 %v492, 0.0
    %v553 = vmax.f32 %v495, 0.0
    %v554 = vmax.f32 %v497, 0.0
    %v555 = vmax.f32 %v500, 0.0
    %v556 = vmax.f32 %v502, 0.0
    %v557 = vmax.f32 %v505, 0.0
    %v558 = vmax.f32 %v507, 0.0
    %v559 = vmax.f32 %v510, 0.0
    %v560 = vmax.f32 %v512, 0.0
    %v561 = vmax.f32 %v515, 0.0
    %v562 = vmax.f32 %v517, 0.0
    %v563 = vmax.f32 %v520, 0.0
    %v564 = vmax.f32 %v522, 0.0
    %v565 = vmax.f32 %v525, 0.0
    %v566 = vmax.f32 %v527, 0.0
    %v567 = vmax.f32 %v530, 0.0
    %v568 = vmax.f32 %v532, 0.0
    %v569 = vmax.f32 %v535, 0.0
    %v570 = vmax.f32 %v537, 0.0
    %v571 = vld [vmem:[#allocation2] sm:$0x3]
    %vm572 = vcmask 523264
    %v573 = vsel %vm572, %v539, 0.0
    %v574 = vsel %vm572, %v540, 0.0
    %v575 = vadd.f32 %v573, %v574
    %v576 = vsel %vm572, %v541, 0.0
    %v577 = vadd.f32 %v575, %v576
    %v578 = vsel %vm572, %v542, 0.0
    %v579 = vadd.f32 %v577, %v578
    %v580 = vsel %vm572, %v543, 0.0
    %v581 = vadd.f32 %v579, %v580
    %v582 = vsel %vm572, %v544, 0.0
    %v583 = vadd.f32 %v581, %v582
    %v584 = vsel %vm572, %v545, 0.0
    %v585 = vadd.f32 %v583, %v584
    %v586 = vsel %vm572, %v546, 0.0
    %v587 = vadd.f32 %v585, %v586
    %v588 = vsel %vm572, %v547, 0.0
    %v589 = vadd.f32 %v587, %v588
    %v590 = vsel %vm572, %v548, 0.0
    %v591 = vadd.f32 %v589, %v590
    %v592 = vsel %vm572, %v549, 0.0
    %v593 = vadd.f32 %v591, %v592
    %v594 = vsel %vm572, %v550, 0.0
    %v595 = vadd.f32 %v593, %v594
    %v596 = vsel %vm572, %v551, 0.0
    %v597 = vadd.f32 %v595, %v596
    %v598 = vsel %vm572, %v552, 0.0
    %v599 = vadd.f32 %v597, %v598
    %v600 = vsel %vm572, %v553, 0.0
    %v601 = vadd.f32 %v599, %v600
    %v602 = vsel %vm572, %v554, 0.0
    %v603 = vadd.f32 %v601, %v602
    %v604 = vrot.slane %v603, 4
    %v605 = vadd.f32 %v603, %v604
    %v606 = vrot.slane %v605, 2
    %v607 = vadd.f32 %v605, %v606
    %v608 = vrot.slane %v607, 1
    %v609 = vadd.f32 %v607, %v608
    %v610 = vsel %vm572, %v555, 0.0
    %v611 = vsel %vm572, %v556, 0.0
    %v612 = vadd.f32 %v610, %v611
    %v613 = vsel %vm572, %v557, 0.0
    %v614 = vadd.f32 %v612, %v613
    %v615 = vsel %vm572, %v558, 0.0
    %v616 = vadd.f32 %v614, %v615
    %v617 = vsel %vm572, %v559, 0.0
    %v618 = vadd.f32 %v616, %v617
    %v619 = vsel %vm572, %v560, 0.0
    %v620 = vadd.f32 %v618, %v619
    %v621 = vsel %vm572, %v561, 0.0
    %v622 = vadd.f32 %v620, %v621
    %v623 = vsel %vm572, %v562, 0.0
    %v624 = vadd.f32 %v622, %v623
    %v625 = vsel %vm572, %v563, 0.0
    %v626 = vadd.f32 %v624, %v625
    %v627 = vsel %vm572, %v564, 0.0
    %v628 = vadd.f32 %v626, %v627
    %v629 = vsel %vm572, %v565, 0.0
    %v630 = vadd.f32 %v628, %v629
    %v631 = vsel %vm572, %v566, 0.0
    %v632 = vadd.f32 %v630, %v631
    %v633 = vsel %vm572, %v567, 0.0
    %v634 = vadd.f32 %v632, %v633
    %v635 = vsel %vm572, %v568, 0.0
    %v636 = vadd.f32 %v634, %v635
    %v637 = vsel %vm572, %v569, 0.0
    %v638 = vadd.f32 %v636, %v637
    %v639 = vsel %vm572, %v570, 0.0
    %v640 = vadd.f32 %v638, %v639
    %v641 = vrot.slane %v640, 4
    %v642 = vadd.f32 %v640, %v641
    %v643 = vrot.slane %v642, 2
    %v644 = vadd.f32 %v642, %v643
    %v645 = vrot.slane %v644, 1
    %v646 = vadd.f32 %v644, %v645
    %vm649 = vcmask 1041409
    %v650 = vsel %vm649, %v646, %v609
    %v652 = vadd.f32 %v571, %v650
    %vm653 = vcmask 517120
    %654 = vst.msk [vmem:[#allocation2] sm:$0x3] %vm653, %v652
    // Predicated region
    $region26: #{tpu_custom_call.1} parent=1 // pred_check
      %p655 = pneg %p35
    $region27: #{tpu_custom_call.1} parent=1 // pred_check_branch
      %657 = sbr.rel (%p655) target = $region29
    $region28: #{tpu_custom_call.1} parent=1 // pred_region
      %v658 = vld [vmem:[#allocation2] sm:$0x3]
      %v659 = vmul.f32 %v658, 0.015625
      %v660 = vpack.c.bf16 %v659, %v659
      %v661 = vld [vmem:[%s2] sm:$0xf]
      %v662 = vld [vmem:[%s2 + $0x4] sm:$0xf]
      %v663 = vld [vmem:[%s2 + $0x8] sm:$0xf]
      %v664 = vld [vmem:[%s2 + $0xc] sm:$0xf]
      %v665 = vld [vmem:[%s2 + $0x10] sm:$0xf]
      %v666 = vld [vmem:[%s2 + $0x14] sm:$0xf]
      %v667 = vld [vmem:[%s2 + $0x18] sm:$0xf]
      %v668 = vld [vmem:[%s2 + $0x1c] sm:$0xf]
      %v669 = vld [vmem:[%s3] sm:$0x1]
      %v671 = vperm.slane %v669, 0
      %v681 = vunpack.c.l.b16 %v661
      %v682 = vunpack.c.l.b16 %v662
      %v683 = vunpack.c.l.b16 %v663
      %v684 = vunpack.c.l.b16 %v664
      %v685 = vunpack.c.l.b16 %v665
      %v686 = vunpack.c.l.b16 %v666
      %v687 = vunpack.c.l.b16 %v667
      %v688 = vunpack.c.l.b16 %v668
      %v689 = vpack.c.b16 %v682, %v681
      %v690 = vpack.c.b16 %v684, %v683
      %v691 = vpack.c.b16 %v686, %v685
      %v692 = vpack.c.b16 %v688, %v687
      %v698 = vsel %vm572, %v660, 0
      %700 = vmatpush.bf16.msra.mxu0 0
      %701 = vmatpush.bf16.msra.mxu0 0
      %702 = vmatpush.bf16.msra.mxu0 0
      %703 = vmatpush.bf16.msra.mxu0 0
      %704 = vmatpush.bf16.msra.mxu0 %v692
      %705 = vmatpush.bf16.msra.mxu0 %v691
      %706 = vmatpush.bf16.msra.mxu0 %v690
      %707 = vmatpush.bf16.msra.mxu0 %v689
      %708 = vmatmul.bf16.gmra.mxu0 %v698
      %v709 = vpop.f32.mrf.mxu0
      %v710 = vadd.f32 %v671, %v709
      %v711 = vpop.f32.mrf.mxu0
      %712 = vdwg.mxu0
      %713 = vst [vmem:[#allocation6] sm:$0x3] %v710
    $region29: #{tpu_custom_call.1} parent=1 // pred_fallthru
      _
    // Predicated region
    $region30: #{tpu_custom_call.1} parent=1 // pred_check
      _
    $region31: #{tpu_custom_call.1} parent=1 // pred_check_branch
      %715 = sbr.rel (0) target = $region33
    $region32: #{tpu_custom_call.1} parent=1 // pred_region
      %717 = vsyncadd [#allocation5], 0
      %s719 = sshll.u32 [#allocation6], 4
      %s720 = int_to_ptr.vmem [resolvable:$true] %s719
      %s721 = sshll.u32 %s4, 4
      %s722 = int_to_ptr.hbm [resolvable:$true] %s721
      %724 = dma.vmem_to_hbm [thread:$0]  %s720, 32, %s722, [#allocation5]
    $region33: #{tpu_custom_call.1} parent=1 // pred_fallthru
      _
    // Predicated region
    $region34: #{tpu_custom_call.1} parent=1 // pred_check
      _
    $region35: #{tpu_custom_call.1} parent=1 // pred_check_branch
      %726 = sbr.rel (0) target = $region37
    $region36: #{tpu_custom_call.1} parent=1 // pred_region
      %728 = dma.done [#allocation5], 32
    $region37: #{tpu_custom_call.1} parent=1 // pred_fallthru
      _
    %729 = vsyncpa [#allocation4], 1
    %730 = vsyncpa [#allocation5], 1

</llo_original>
